<compile_context>
chip_gen: v5e
topology: v5e:2x2
jax: 0.10.0
libtpu: 0.0.40
codegen_flags: <defaults>
</compile_context>

<pallas_src>
import math
import functools

import jax
import jax.numpy as jnp
from jax import lax
from jax.experimental import pallas as pl
from jax.experimental.pallas import tpu as pltpu


# --------------------------------------------------------------------------- helpers

def _round_up(x, m):
    return ((x + m - 1) // m) * m


def _pad2(a, rows, cols):
    return jnp.pad(a, ((0, rows - a.shape[0]), (0, cols - a.shape[1])))


def _choose_tile(padded, max_tile):
    """Largest multiple-of-128 divisor of `padded` that is <= max_tile, preferring a proper
    divisor so the parallel grid axis has >= 2 steps (keeps both v7x TensorCores busy)."""
    divisors = [t for t in range(128, padded + 1, 128) if padded % t == 0]
    proper = [t for t in divisors if t <= max_tile and t < padded]
    if proper:
        return max(proper)
    fitting = [t for t in divisors if t <= max_tile]
    return max(fitting) if fitting else min(divisors)


def _vmem_capacity_bytes():
    try:
        info = pltpu.get_tpu_info()
        for name in ("vmem_capacity_bytes", "vmem_size_bytes", "vmem_bytes"):
            v = getattr(info, name, None)
            if v:
                return int(v)
    except Exception:
        pass
    return 64 * 1024 * 1024  # conservative default = v7x per-core VMEM


_VMEM_CAP = _vmem_capacity_bytes()
_FUSED_VMEM_FRACTION = 0.45  # keep ~2x headroom for double buffers / compiler scratch


def _vmem_limit(raw_bytes):
    """Scoped-VMEM request: derived from the actual block footprint with headroom, capped
    safely below the physical per-core VMEM (never the hard-coded 64 MiB of before)."""
    cap = int(0.9 * _VMEM_CAP)
    return int(max(min(2 * raw_bytes + (8 << 20), cap), min(16 << 20, cap)))


def _cparams(dim_sem, raw_bytes):
    return pltpu.CompilerParams(dimension_semantics=dim_sem,
                                vmem_limit_bytes=_vmem_limit(raw_bytes))


# --------------------------------------------------------------------------- dense layers

def _linear_kernel(x_ref, w_ref, b_ref, o_ref, *, relu):
    y = jnp.dot(x_ref[...], w_ref[...], preferred_element_type=jnp.float32) + b_ref[...]
    if relu:
        y = jnp.maximum(y, 0.0)
    o_ref[...] = y.astype(o_ref.dtype)


def linear(x, w, b, *, relu, tile_n, out_dtype=jnp.bfloat16):
    n_p, f_p = x.shape
    c_p = w.shape[1]
    raw = 2 * (tile_n * f_p * 2 + f_p * c_p * 2 + c_p * 4
               + tile_n * c_p * jnp.dtype(out_dtype).itemsize)
    return pl.pallas_call(
        functools.partial(_linear_kernel, relu=relu),
        out_shape=jax.ShapeDtypeStruct((n_p, c_p), out_dtype),
        grid=(n_p // tile_n,),
        in_specs=[
            pl.BlockSpec((tile_n, f_p), lambda i: (i, 0)),
            pl.BlockSpec((f_p, c_p), lambda i: (0, 0)),   # weight: constant block -> resident
            pl.BlockSpec((1, c_p), lambda i: (0, 0)),     # bias:   constant block -> resident
        ],
        out_specs=pl.BlockSpec((tile_n, c_p), lambda i: (i, 0)),
        compiler_params=_cparams(("parallel",), raw),
    )(x, w, b.reshape(1, -1))


def _classifier_kernel(x_ref, w_ref, b_ref, o_ref, *, nclass):
    logits = jnp.dot(x_ref[...], w_ref[...], preferred_element_type=jnp.float32) + b_ref[...]
    col = lax.broadcasted_iota(jnp.int32, logits.shape, 1)
    logits = jnp.where(col < nclass, logits, -1e30)        # mask lane-padded classes
    m = jnp.max(logits, axis=-1, keepdims=True)
    z = logits - m
    lse = jnp.log(jnp.sum(jnp.exp(z), axis=-1, keepdims=True))
    o_ref[...] = (z - lse).astype(o_ref.dtype)


def classifier_logsoftmax(x, w, b, nclass, *, tile_n):
    n_p, c_p = x.shape
    k_p = w.shape[1]
    raw = 2 * (tile_n * c_p * 2 + c_p * k_p * 2 + k_p * 4 + tile_n * k_p * 4)
    return pl.pallas_call(
        functools.partial(_classifier_kernel, nclass=nclass),
        out_shape=jax.ShapeDtypeStruct((n_p, k_p), jnp.float32),
        grid=(n_p // tile_n,),
        in_specs=[
            pl.BlockSpec((tile_n, c_p), lambda i: (i, 0)),
            pl.BlockSpec((c_p, k_p), lambda i: (0, 0)),
            pl.BlockSpec((1, k_p), lambda i: (0, 0)),
        ],
        out_specs=pl.BlockSpec((tile_n, k_p), lambda i: (i, 0)),
        compiler_params=_cparams(("parallel",), raw),
    )(x, w, b.reshape(1, -1))


# --------------------------------------------------------------------------- tiled fallback

def _v2e_kernel(ht_ref, x_ref, escale_ref, xe_ref, acc_ref):
    """Xe tile = edge_scale * sum over node tiles of H^T_tile @ X_tile (natural MXU matmul)."""
    k = pl.program_id(1)

    @pl.when(k == 0)
    def _():
        acc_ref[...] = jnp.zeros_like(acc_ref)

    acc_ref[...] += jnp.dot(ht_ref[...], x_ref[...], preferred_element_type=jnp.float32)

    @pl.when(k == pl.num_programs(1) - 1)
    def _():
        xe_ref[...] = (escale_ref[...] * acc_ref[...]).astype(xe_ref.dtype)


def v2e_aggregate(ht_pad, x, edge_scale, *, tile_n, tile_e):
    e_p, n_p = ht_pad.shape
    c_p = x.shape[1]
    raw = (2 * tile_e * tile_n * 2 + 2 * tile_n * c_p * 2 + 2 * tile_e * 4
           + 2 * tile_e * c_p * 2 + tile_e * c_p * 4)
    # TODO(synk): add pipeline_mode=pl.Buffered(3) on the H^T spec if DMA is still exposed
    # (wall vs compute) after the larger tiles on real-size graphs.
    return pl.pallas_call(
        _v2e_kernel,
        out_shape=jax.ShapeDtypeStruct((e_p, c_p), jnp.bfloat16),
        grid=(e_p // tile_e, n_p // tile_n),               # reduction axis (nodes) last
        in_specs=[
            pl.BlockSpec((tile_e, tile_n), lambda e, n: (e, n)),   # H^T tile (bf16)
            pl.BlockSpec((tile_n, c_p), lambda e, n: (n, 0)),      # X tile   (bf16)
            pl.BlockSpec((tile_e, 1), lambda e, n: (e, 0)),        # per-edge scale column
        ],
        out_specs=pl.BlockSpec((tile_e, c_p), lambda e, n: (e, 0)),
        scratch_shapes=[pltpu.VMEM((tile_e, c_p), jnp.float32)],
        compiler_params=_cparams(("parallel", "arbitrary"), raw),
    )(ht_pad, x, edge_scale)


def _e2v_kernel(h_ref, xe_ref, nscale_ref, x0_ref, w_ref, o_ref, acc_ref, *, alpha, beta):
    """Xv tile = node_scale * sum over edge tiles of H_tile @ Xe_tile, then GCNII combine."""
    k = pl.program_id(1)

    @pl.when(k == 0)
    def _():
        acc_ref[...] = jnp.zeros_like(acc_ref)

    acc_ref[...] += jnp.dot(h_ref[...], xe_ref[...], preferred_element_type=jnp.float32)

    @pl.when(k == pl.num_programs(1) - 1)
    def _():
        xv = nscale_ref[...] * acc_ref[...]
        xi = (1.0 - alpha) * xv + alpha * x0_ref[...].astype(jnp.float32)
        y = (1.0 - beta) * xi + beta * jnp.dot(xi.astype(jnp.bfloat16), w_ref[...],
                                               preferred_element_type=jnp.float32)
        o_ref[...] = jnp.maximum(y, 0.0).astype(o_ref.dtype)


def e2v_combine(h_pad, xe, node_scale, x0, w, alpha, beta, *, tile_n, tile_e):
    n_p, e_p = h_pad.shape
    c_p = xe.shape[1]
    raw = (2 * tile_n * tile_e * 2 + 2 * tile_e * c_p * 2 + 2 * tile_n * 4
           + 2 * tile_n * c_p * 2 + 2 * c_p * c_p * 2 + 2 * tile_n * c_p * 2
           + tile_n * c_p * 4)
    return pl.pallas_call(
        functools.partial(_e2v_kernel, alpha=float(alpha), beta=float(beta)),
        out_shape=jax.ShapeDtypeStruct((n_p, c_p), jnp.bfloat16),
        grid=(n_p // tile_n, e_p // tile_e),               # reduction axis (edges) last
        in_specs=[
            pl.BlockSpec((tile_n, tile_e), lambda n, e: (n, e)),   # H tile (bf16)
            pl.BlockSpec((tile_e, c_p), lambda n, e: (e, 0)),      # Xe tile (bf16)
            pl.BlockSpec((tile_n, 1), lambda n, e: (n, 0)),        # per-node scale column
            pl.BlockSpec((tile_n, c_p), lambda n, e: (n, 0)),      # X0 tile (resident over e)
            pl.BlockSpec((c_p, c_p), lambda n, e: (0, 0)),         # conv weight: resident bf16
        ],
        out_specs=pl.BlockSpec((tile_n, c_p), lambda n, e: (n, 0)),
        scratch_shapes=[pltpu.VMEM((tile_n, c_p), jnp.float32)],
        compiler_params=_cparams(("parallel", "arbitrary"), raw),
    )(h_pad, xe, node_scale, x0, w)


# --------------------------------------------------------------------------- fused layer stack

def _stack_kernel(ht_ref, h_ref, x0_ref, escale_ref, nscale_ref, betas_ref, w_ref,
                  o_ref, xe_ref, *, alpha):
    """One grid step per UniGCNII layer.  H / H^T / X0 / scale columns stay VMEM resident
    across layers, the hidden state is carried in the (constant-index) output buffer and the
    Xe intermediate lives in VMEM scratch (no HBM round trip)."""
    l = pl.program_id(0)

    @pl.when(l == 0)
    def _():
        o_ref[...] = x0_ref[...]                           # hidden state <- X0

    # V->E aggregation: Xe = edge_scale * (H^T @ X)
    xe_ref[...] = (escale_ref[...] *
                   jnp.dot(ht_ref[...], o_ref[...], preferred_element_type=jnp.float32)
                   ).astype(xe_ref.dtype)

    # E->V aggregation + GCNII combine + ReLU
    xv = nscale_ref[...] * jnp.dot(h_ref[...], xe_ref[...], preferred_element_type=jnp.float32)
    xi = (1.0 - alpha) * xv + alpha * x0_ref[...].astype(jnp.float32)

    lane = lax.broadcasted_iota(jnp.int32, betas_ref.shape, 1)
    beta = jnp.sum(jnp.where(lane == l, betas_ref[...], 0.0))   # select this layer's beta

    y = (1.0 - beta) * xi + beta * jnp.dot(xi.astype(jnp.bfloat16), w_ref[0],
                                           preferred_element_type=jnp.float32)
    o_ref[...] = jnp.maximum(y, 0.0).astype(o_ref.dtype)


def _fused_raw_bytes(n_p, e_p, c_p, beta_lanes):
    return (2 * n_p * e_p * 2          # H and H^T resident (bf16)
            + 2 * n_p * c_p * 2        # X0 + hidden-state/output buffer (bf16)
            + e_p * c_p * 2            # Xe VMEM scratch (bf16)
            + (n_p + e_p) * 4          # scale columns (f32)
            + beta_lanes * 4           # per-layer beta row (f32)
            + 2 * c_p * c_p * 2)       # double-buffered per-layer conv weight (bf16)


def unigcnii_stack_fused(ht_pad, h_pad, x0, edge_scale, node_scale, w_stack, betas_row, alpha):
    e_p, n_p = ht_pad.shape
    c_p = x0.shape[1]
    nlayer = w_stack.shape[0]
    raw = _fused_raw_bytes(n_p, e_p, c_p, betas_row.shape[1])
    return pl.pallas_call(
        functools.partial(_stack_kernel, alpha=float(alpha)),
        out_shape=jax.ShapeDtypeStruct((n_p, c_p), jnp.bfloat16),
        grid=(nlayer,),
        in_specs=[
            pl.BlockSpec((e_p, n_p), lambda l: (0, 0)),            # H^T (resident)
            pl.BlockSpec((n_p, e_p), lambda l: (0, 0)),            # H   (resident)
            pl.BlockSpec((n_p, c_p), lambda l: (0, 0)),            # X0  (resident)
            pl.BlockSpec((e_p, 1), lambda l: (0, 0)),              # edge scale column
            pl.BlockSpec((n_p, 1), lambda l: (0, 0)),              # node scale column
            pl.BlockSpec(betas_row.shape, lambda l: (0, 0)),       # per-layer beta row
            pl.BlockSpec((1, c_p, c_p), lambda l: (l, 0, 0)),      # conv weight of layer l
        ],
        out_specs=pl.BlockSpec((n_p, c_p), lambda l: (0, 0)),
        scratch_shapes=[pltpu.VMEM((e_p, c_p), jnp.bfloat16)],
        # Layer steps carry state (output buffer + Xe scratch) -> must run sequentially.
        compiler_params=_cparams(("arbitrary",), raw),
    )(ht_pad, h_pad, x0, edge_scale, node_scale, betas_row, w_stack)


# --------------------------------------------------------------------------- model glue

def init_params(key, nfeat, nhid, nclass, nlayer):
    ks = jax.random.split(key, 2 + nlayer)

    def dense(k, fan_in, fan_out):
        scale = 1.0 / math.sqrt(fan_in)
        return jax.random.uniform(k, (fan_in, fan_out), jnp.float32, -scale, scale)

    return {
        "w_in": dense(ks[0], nfeat, nhid),
        "b_in": jnp.zeros((nhid,), jnp.float32),
        "w_out": dense(ks[1], nhid, nclass),
        "b_out": jnp.zeros((nclass,), jnp.float32),
        # UniGCNII conv weights: Linear(nhid, nhid, bias=False)
        "w_conv": [dense(ks[2 + i], nhid, nhid) for i in range(nlayer)],
    }


def build_incidence(key, n_nodes, n_edges):
    """Dense 0/1 incidence matrix H [N, E]; every node in >=1 edge, every edge non-empty."""
    h = jax.random.bernoulli(key, 0.15, (n_nodes, n_edges)).astype(jnp.float32)
    h = h.at[jnp.arange(n_nodes), jnp.arange(n_nodes) % n_edges].set(1.0)
    h = h.at[jnp.arange(n_edges) % n_nodes, jnp.arange(n_edges)].set(1.0)
    return h


def preprocess_hypergraph(h, n_p, e_p):
    """bf16 copies of H and H^T plus per-edge / per-node scale columns (UniGNN degE / degV),
    guarded against empty hyperedges / isolated nodes."""
    n, e = h.shape
    h = h.astype(jnp.float32)
    d_v = h.sum(axis=1)                               # node degree
    d_e = h.sum(axis=0)                               # edge size
    safe_de = jnp.where(d_e > 0, d_e, 1.0)
    safe_dv = jnp.where(d_v > 0, d_v, 1.0)
    avg_dv = (h.T @ d_v) / safe_de                    # mean node degree per edge
    avg_dv = jnp.where(avg_dv > 0, avg_dv, 1.0)
    edge_scale = jnp.where(d_e > 0, (avg_dv ** -0.5) / safe_de, 0.0)  # degE^-1/2 * (1/|e|)
    node_scale = jnp.where(d_v > 0, safe_dv ** -0.5, 0.0)             # degV^-1/2
    h_pad = _pad2(h, n_p, e_p).astype(jnp.bfloat16)
    ht_pad = _pad2(h.T, e_p, n_p).astype(jnp.bfloat16)
    edge_scale = jnp.pad(edge_scale, (0, e_p - e)).reshape(e_p, 1).astype(jnp.float32)
    node_scale = jnp.pad(node_scale, (0, n_p - n)).reshape(n_p, 1).astype(jnp.float32)
    return h_pad, ht_pad, edge_scale, node_scale


def _pad_params(params, f_p, c_p, k_p):
    return {
        "w_in": _pad2(params["w_in"], f_p, c_p).astype(jnp.bfloat16),
        "b_in": jnp.pad(params["b_in"], (0, c_p - params["b_in"].shape[0])),
        "w_out": _pad2(params["w_out"], c_p, k_p).astype(jnp.bfloat16),
        "b_out": jnp.pad(params["b_out"], (0, k_p - params["b_out"].shape[0])),
        "w_conv": [_pad2(w, c_p, c_p).astype(jnp.bfloat16) for w in params["w_conv"]],
    }


def unigcnii_forward(params, h, x, nlayer, nclass, *, max_tile_n=1024, max_tile_e=1024,
                     force_tiled=False):
    lamda, alpha = 0.5, 0.1
    n, nfeat = x.shape
    e = h.shape[1]
    nhid = params["w_in"].shape[1]

    n_p, e_p = _round_up(n, 128), _round_up(e, 128)
    f_p, c_p, k_p = _round_up(nfeat, 128), _round_up(nhid, 128), _round_up(nclass, 128)
    tile_n = _choose_tile(n_p, max_tile_n)
    tile_e = _choose_tile(e_p, max_tile_e)

    h_pad, ht_pad, edge_scale, node_scale = preprocess_hypergraph(h, n_p, e_p)
    x_pad = _pad2(x, n_p, f_p).astype(jnp.bfloat16)
    p = _pad_params(params, f_p, c_p, k_p)

    # input dropout / hidden dropouts -> identity (inference); first Linear + ReLU (bf16 out)
    xh = linear(x_pad, p["w_in"], p["b_in"], relu=True, tile_n=tile_n)
    x0 = xh
    betas = [math.log(lamda / (i + 1) + 1.0) for i in range(nlayer)]

    beta_lanes = _round_up(max(nlayer, 1), 128)
    fused_fits = (_fused_raw_bytes(n_p, e_p, c_p, beta_lanes)
                  <= int(_FUSED_VMEM_FRACTION * _VMEM_CAP))

    if nlayer > 0 and fused_fits and not force_tiled:
        betas_row = jnp.zeros((1, beta_lanes), jnp.float32)
        betas_row = betas_row.at[0, :nlayer].set(jnp.array(betas, jnp.float32))
        w_stack = jnp.stack(p["w_conv"])
        xh = unigcnii_stack_fused(ht_pad, h_pad, x0, edge_scale, node_scale,
                                  w_stack, betas_row, alpha)
    else:
        # TODO(synk): per-layer v2e+e2v fusion (Xe staged in VMEM) for the mid-size regime
        # where the full H/H^T don't fit VMEM but Xe does.
        for i in range(nlayer):
            xe = v2e_aggregate(ht_pad, xh, edge_scale, tile_n=tile_n, tile_e=tile_e)
            xh = e2v_combine(h_pad, xe, node_scale, x0, p["w_conv"][i], alpha, betas[i],
                             tile_n=tile_n, tile_e=tile_e)

    # final dropout -> identity; classifier + log_softmax(dim=1)
    out = classifier_logsoftmax(xh, p["w_out"], p["b_out"], nclass, tile_n=tile_n)
    return out[:n, :nclass]
    # TODO(synk): training-mode dropout (pltpu.prng_random_bits masks) omitted; inference
    # semantics match the PyTorch module in eval() mode.


if __name__ == "__main__":
    N_NODES, N_EDGES = 64, 32
    NFEAT, NHID_PER_HEAD, NHEAD, NCLASS, NLAYER = 32, 8, 4, 8, 2
    NHID = NHID_PER_HEAD * NHEAD  # 32, matches `nhid = nhid * nhead`

    key = jax.random.PRNGKey(0)
    k_x, k_g, k_p = jax.random.split(key, 3)

    x = jax.random.normal(k_x, (N_NODES, NFEAT), jnp.float32)
    h = build_incidence(k_g, N_NODES, N_EDGES)
    params = init_params(k_p, NFEAT, NHID, NCLASS, NLAYER)

    out = jax.block_until_ready(unigcnii_forward(params, h, x, NLAYER, NCLASS))
    assert out.shape == (N_NODES, NCLASS)
    # log_softmax rows must exponentiate-sum to ~1
    row_sums = jnp.exp(out).sum(axis=1)
    assert bool(jnp.all(jnp.abs(row_sums - 1.0) < 1e-3))

    # Exercise the tiled fallback path too and cross-check it against the fused path.
    out_tiled = jax.block_until_ready(
        unigcnii_forward(params, h, x, NLAYER, NCLASS, force_tiled=True))
    assert out_tiled.shape == (N_NODES, NCLASS)
    assert bool(jnp.max(jnp.abs(out_tiled - out)) < 5e-2)

    print("KERNEL_OK")
</pallas_src>

<mosaic_0001>
module attributes {stable_mosaic.version = 11 : i64} {
  func.func @_linear_kernel(%arg0: i32, %arg1: memref<128x128xbf16, #tpu.memory_space<vmem>>, %arg2: memref<128x128xbf16, #tpu.memory_space<vmem>>, %arg3: memref<1x128xf32, #tpu.memory_space<vmem>>, %arg4: memref<128x128xbf16, #tpu.memory_space<vmem>>) attributes {dimension_semantics = [#tpu.dimension_semantics<parallel>], iteration_bounds = array<i64: 1>, scalar_prefetch = 0 : i64, scratch_operands = 0 : i64, tpu.core_type = #tpu.core_type<tc>, window_params = [{transform_indices = @transform_0, window_bounds = array<i64: 128, 128>}, {pipeline_mode = #tpu.pipeline_mode<synchronous>, transform_indices = @transform_1, window_bounds = array<i64: 128, 128>}, {pipeline_mode = #tpu.pipeline_mode<synchronous>, transform_indices = @transform_2, window_bounds = array<i64: 1, 128>}, {transform_indices = @transform_3, window_bounds = array<i64: 128, 128>}]} {
    %c0 = arith.constant 0 : index
    %c0_0 = arith.constant 0 : index
    %0 = vector.load %arg1[%c0, %c0_0] : memref<128x128xbf16, #tpu.memory_space<vmem>>, vector<128x128xbf16>
    %c0_1 = arith.constant 0 : index
    %c0_2 = arith.constant 0 : index
    %1 = vector.load %arg2[%c0_1, %c0_2] : memref<128x128xbf16, #tpu.memory_space<vmem>>, vector<128x128xbf16>
    %cst = arith.constant dense<0.000000e+00> : vector<128x128xf32>
    %2 = tpu.matmul %0, %1, %cst {dimension_numbers = #tpu.dot_dimension_numbers<[1], [0], [0], [1], [0, 0, 1, 1], [], []>} : vector<128x128xbf16>, vector<128x128xbf16>, vector<128x128xf32> -> vector<128x128xf32>
    %c0_3 = arith.constant 0 : index
    %c0_4 = arith.constant 0 : index
    %3 = vector.load %arg3[%c0_3, %c0_4] : memref<1x128xf32, #tpu.memory_space<vmem>>, vector<1x128xf32>
    %4 = vector.broadcast %3 : vector<1x128xf32> to vector<128x128xf32>
    %5 = arith.addf %2, %4 : vector<128x128xf32>
    %cst_5 = arith.constant 0.000000e+00 : f32
    %6 = vector.broadcast %cst_5 : f32 to vector<128x128xf32>
    %7 = arith.maximumf %5, %6 : vector<128x128xf32>
    %8 = arith.truncf %7 : vector<128x128xf32> to vector<128x128xbf16>
    %c0_6 = arith.constant 0 : index
    %c0_7 = arith.constant 0 : index
    %9 = vector.load %arg4[%c0_6, %c0_7] : memref<128x128xbf16, #tpu.memory_space<vmem>>, vector<128x128xbf16>
    tpu.vector_store %arg4[%c0_6, %c0_7], %8 {strides = array<i32>} : memref<128x128xbf16, #tpu.memory_space<vmem>>, vector<128x128xbf16>,
    return
  }
  func.func @transform_0(%arg0: i32) -> (i32, i32) {
    %c0_i32 = arith.constant 0 : i32
    %c0_i32_0 = arith.constant 0 : i32
    return %arg0, %c0_i32 : i32, i32
  }
  func.func @transform_1(%arg0: i32) -> (i32, i32) {
    %c0_i32 = arith.constant 0 : i32
    %c0_i32_0 = arith.constant 0 : i32
    %c0_i32_1 = arith.constant 0 : i32
    return %c0_i32, %c0_i32_0 : i32, i32
  }
  func.func @transform_2(%arg0: i32) -> (i32, i32) {
    %c0_i32 = arith.constant 0 : i32
    %c0_i32_0 = arith.constant 0 : i32
    %c0_i32_1 = arith.constant 0 : i32
    return %c0_i32, %c0_i32_0 : i32, i32
  }
  func.func @transform_3(%arg0: i32) -> (i32, i32) {
    %c0_i32 = arith.constant 0 : i32
    %c0_i32_0 = arith.constant 0 : i32
    return %arg0, %c0_i32 : i32, i32
  }
}

</mosaic_0001>

<llo_original>
// kernel: tpu_custom_call.1
$region0: #{tpu_custom_call.1}
  #allocation0 [shape = 'u32[]', space=smem, size = 0x4, offset = 0x4, fixed_abs, tag = 'smem constant byte address 0x4 - core index']
  #allocation1 [shape = 'u32[72,128]{1,0:T(1,128)}', space=vmem, size = 0x9000, scoped, tag = 'internal scratch']
  %s0 = inlined_call_operand.hbm [shape: bf16[128,128], index: 0, kind: input, shape index: {}]
  %s1 = inlined_call_operand.hbm [shape: bf16[128,128], index: 1, kind: input, shape index: {}]
  %s2 = inlined_call_operand.vmem [shape: f32[1,128], index: 2, kind: input, shape index: {}]
  %s3 = inlined_call_operand.hbm [shape: bf16[128,128], index: 3, kind: output, shape index: {}]
  %s4 = sld [smem:[#allocation0]]
  $region30: #{tpu_custom_call.1} parent=0
    _
  %s6 = ssub.s32 1, %s4
  %s7 = scalar_select 0, %s6, %s4
  $region1: #{tpu_custom_call.1} parent=0
    #allocation2 [shape = 'u8[32768]{0}', space=vmem, size = 0x8000, scoped, tag = 'input window, operand 0, single buffered']
    #allocation3 [shape = 's32[1]{0}', space=sflag, size = 0x4, scoped, tag = 'scoped memory for tpu_custom_call.1']
    #allocation4 [shape = 's32[1]{0}', space=sflag, size = 0x4, scoped, tag = 'scoped memory for tpu_custom_call.1']
    #allocation5 [shape = 'u8[32768]{0}', space=vmem, size = 0x8000, scoped, tag = 'input window, operand 1, single buffered']
    #allocation6 [shape = 's32[1]{0}', space=sflag, size = 0x4, scoped, tag = 'scoped memory for tpu_custom_call.1']
    #allocation7 [shape = 'u8[32768]{0}', space=vmem, size = 0x8000, scoped, tag = 'output window, operand 0, single buffered']
    %8 = vsyncpa [#allocation3], 0
    %9 = vsyncpa [#allocation6], 0
    %10 = vsyncpa [#allocation4], 0
    // Predicated region
    $region2: #{tpu_custom_call.1} parent=1 // pred_check
      _
    $region3: #{tpu_custom_call.1} parent=1 // pred_check_branch
      %12 = sbr.rel (0) target = $region5
    $region4: #{tpu_custom_call.1} parent=1 // pred_region
      %14 = vsyncadd [#allocation3], 0
      %s15 = sshll.u32 %s0, 4
      %s16 = int_to_ptr.hbm [resolvable:$true] %s15
      %s17 = sshll.u32 [#allocation2], 4
      %s18 = int_to_ptr.vmem [resolvable:$true] %s17
      %23 = dma.hbm_to_vmem [thread:$0]  %s16, 1024, %s18, [#allocation3], 64, 64, 4
    $region5: #{tpu_custom_call.1} parent=1 // pred_fallthru
      _
    // Predicated region
    $region6: #{tpu_custom_call.1} parent=1 // pred_check
      _
    $region7: #{tpu_custom_call.1} parent=1 // pred_check_branch
      %25 = sbr.rel (0) target = $region9
    $region8: #{tpu_custom_call.1} parent=1 // pred_region
      %27 = vsyncadd [#allocation6], 0
      %s28 = sshll.u32 %s1, 4
      %s29 = int_to_ptr.hbm [resolvable:$true] %s28
      %s30 = sshll.u32 [#allocation5], 4
      %s31 = int_to_ptr.vmem [resolvable:$true] %s30
      %36 = dma.hbm_to_vmem [thread:$0]  %s29, 1024, %s31, [#allocation6], 64, 64, 4
    $region9: #{tpu_custom_call.1} parent=1 // pred_fallthru
      _
    // Predicated region
    $region10: #{tpu_custom_call.1} parent=1 // pred_check
      _
    $region11: #{tpu_custom_call.1} parent=1 // pred_check_branch
      %38 = sbr.rel (0) target = $region13
    $region12: #{tpu_custom_call.1} parent=1 // pred_region
      _
    $region13: #{tpu_custom_call.1} parent=1 // pred_fallthru
      _
    // Predicated region
    $region14: #{tpu_custom_call.1} parent=1 // pred_check
      _
    $region15: #{tpu_custom_call.1} parent=1 // pred_check_branch
      %40 = sbr.rel (0) target = $region17
    $region16: #{tpu_custom_call.1} parent=1 // pred_region
      %42 = dma.done [#allocation3], 1024
    $region17: #{tpu_custom_call.1} parent=1 // pred_fallthru
      _
    // Predicated region
    $region18: #{tpu_custom_call.1} parent=1 // pred_check
      _
    $region19: #{tpu_custom_call.1} parent=1 // pred_check_branch
      %44 = sbr.rel (0) target = $region21
    $region20: #{tpu_custom_call.1} parent=1 // pred_region
      %46 = dma.done [#allocation6], 1024
    $region21: #{tpu_custom_call.1} parent=1 // pred_fallthru
      _
    %v47 = vld [vmem:[#allocation2] sm:$0xf]
    %v48 = vld [vmem:[#allocation2 + $0x4] sm:$0xf]
    %v49 = vld [vmem:[#allocation2 + $0x8] sm:$0xf]
    %v50 = vld [vmem:[#allocation2 + $0xc] sm:$0xf]
    %v51 = vld [vmem:[#allocation2 + $0x10] sm:$0xf]
    %v52 = vld [vmem:[#allocation2 + $0x14] sm:$0xf]
    %v53 = vld [vmem:[#allocation2 + $0x18] sm:$0xf]
    %v54 = vld [vmem:[#allocation2 + $0x1c] sm:$0xf]
    %v55 = vld [vmem:[#allocation2 + $0x20] sm:$0xf]
    %v56 = vld [vmem:[#allocation2 + $0x24] sm:$0xf]
    %v57 = vld [vmem:[#allocation2 + $0x28] sm:$0xf]
    %v58 = vld [vmem:[#allocation2 + $0x2c] sm:$0xf]
    %v59 = vld [vmem:[#allocation2 + $0x30] sm:$0xf]
    %v60 = vld [vmem:[#allocation2 + $0x34] sm:$0xf]
    %v61 = vld [vmem:[#allocation2 + $0x38] sm:$0xf]
    %v62 = vld [vmem:[#allocation2 + $0x3c] sm:$0xf]
    %v63 = vld [vmem:[#allocation5] sm:$0xf]
    %v64 = vld [vmem:[#allocation5 + $0x4] sm:$0xf]
    %v65 = vld [vmem:[#allocation5 + $0x8] sm:$0xf]
    %v66 = vld [vmem:[#allocation5 + $0xc] sm:$0xf]
    %v67 = vld [vmem:[#allocation5 + $0x10] sm:$0xf]
    %v68 = vld [vmem:[#allocation5 + $0x14] sm:$0xf]
    %v69 = vld [vmem:[#allocation5 + $0x18] sm:$0xf]
    %v70 = vld [vmem:[#allocation5 + $0x1c] sm:$0xf]
    %v71 = vld [vmem:[#allocation5 + $0x20] sm:$0xf]
    %v72 = vld [vmem:[#allocation5 + $0x24] sm:$0xf]
    %v73 = vld [vmem:[#allocation5 + $0x28] sm:$0xf]
    %v74 = vld [vmem:[#allocation5 + $0x2c] sm:$0xf]
    %v75 = vld [vmem:[#allocation5 + $0x30] sm:$0xf]
    %v76 = vld [vmem:[#allocation5 + $0x34] sm:$0xf]
    %v77 = vld [vmem:[#allocation5 + $0x38] sm:$0xf]
    %v78 = vld [vmem:[#allocation5 + $0x3c] sm:$0xf]
    %v79 = vld [vmem:[%s2] sm:$0x1]
    %v81 = vperm.slane %v79, 0
    %v99 = vunpack.c.l.b16 %v47
    %v100 = vunpack.c.l.b16 %v48
    %v101 = vunpack.c.l.b16 %v49
    %v102 = vunpack.c.l.b16 %v50
    %v103 = vunpack.c.l.b16 %v51
    %v104 = vunpack.c.l.b16 %v52
    %v105 = vunpack.c.l.b16 %v53
    %v106 = vunpack.c.l.b16 %v54
    %v107 = vunpack.c.l.b16 %v55
    %v108 = vunpack.c.l.b16 %v56
    %v109 = vunpack.c.l.b16 %v57
    %v110 = vunpack.c.l.b16 %v58
    %v111 = vunpack.c.l.b16 %v59
    %v112 = vunpack.c.l.b16 %v60
    %v113 = vunpack.c.l.b16 %v61
    %v114 = vunpack.c.l.b16 %v62
    %v115 = vpack.c.b16 %v100, %v99
    %v116 = vpack.c.b16 %v102, %v101
    %v117 = vpack.c.b16 %v104, %v103
    %v118 = vpack.c.b16 %v106, %v105
    %v119 = vpack.c.b16 %v108, %v107
    %v120 = vpack.c.b16 %v110, %v109
    %v121 = vpack.c.b16 %v112, %v111
    %v122 = vpack.c.b16 %v114, %v113
    %v147 = vunpack.c.l.b16 %v63
    %v148 = vunpack.c.l.b16 %v64
    %v149 = vunpack.c.l.b16 %v65
    %v150 = vunpack.c.l.b16 %v66
    %v151 = vunpack.c.l.b16 %v67
    %v152 = vunpack.c.l.b16 %v68
    %v153 = vunpack.c.l.b16 %v69
    %v154 = vunpack.c.l.b16 %v70
    %v155 = vunpack.c.l.b16 %v71
    %v156 = vunpack.c.l.b16 %v72
    %v157 = vunpack.c.l.b16 %v73
    %v158 = vunpack.c.l.b16 %v74
    %v159 = vunpack.c.l.b16 %v75
    %v160 = vunpack.c.l.b16 %v76
    %v161 = vunpack.c.l.b16 %v77
    %v162 = vunpack.c.l.b16 %v78
    %v163 = vpack.c.b16 %v148, %v147
    %v164 = vpack.c.b16 %v150, %v149
    %v165 = vpack.c.b16 %v152, %v151
    %v166 = vpack.c.b16 %v154, %v153
    %v167 = vpack.c.b16 %v156, %v155
    %v168 = vpack.c.b16 %v158, %v157
    %v169 = vpack.c.b16 %v160, %v159
    %v170 = vpack.c.b16 %v162, %v161
    %179 = vmatpush.bf16.msra.mxu0 %v170
    %180 = vmatpush.bf16.msra.mxu0 %v169
    %181 = vmatpush.bf16.msra.mxu0 %v168
    %182 = vmatpush.bf16.msra.mxu0 %v167
    %183 = vmatpush.bf16.msra.mxu0 %v166
    %184 = vmatpush.bf16.msra.mxu0 %v165
    %185 = vmatpush.bf16.msra.mxu0 %v164
    %186 = vmatpush.bf16.msra.mxu0 %v163
    %187 = vmatmul.bf16.gmra.mxu0 %v115
    %v188 = vpop.f32.mrf.mxu0
    %v189 = vadd.f32 %v81, %v188
    %v190 = vpop.f32.mrf.mxu0
    %v191 = vadd.f32 %v81, %v190
    %192 = vmatmul.bf16.gmra.mxu0 %v116
    %v193 = vpop.f32.mrf.mxu0
    %v194 = vadd.f32 %v81, %v193
    %v195 = vpop.f32.mrf.mxu0
    %v196 = vadd.f32 %v81, %v195
    %197 = vmatmul.bf16.gmra.mxu0 %v117
    %v198 = vpop.f32.mrf.mxu0
    %v199 = vadd.f32 %v81, %v198
    %v200 = vpop.f32.mrf.mxu0
    %v201 = vadd.f32 %v81, %v200
    %202 = vmatmul.bf16.gmra.mxu0 %v118
    %v203 = vpop.f32.mrf.mxu0
    %v204 = vadd.f32 %v81, %v203
    %v205 = vpop.f32.mrf.mxu0
    %v206 = vadd.f32 %v81, %v205
    %207 = vmatmul.bf16.gmra.mxu0 %v119
    %v208 = vpop.f32.mrf.mxu0
    %v209 = vadd.f32 %v81, %v208
    %v210 = vpop.f32.mrf.mxu0
    %v211 = vadd.f32 %v81, %v210
    %212 = vmatmul.bf16.gmra.mxu0 %v120
    %v213 = vpop.f32.mrf.mxu0
    %v214 = vadd.f32 %v81, %v213
    %v215 = vpop.f32.mrf.mxu0
    %v216 = vadd.f32 %v81, %v215
    %217 = vmatmul.bf16.gmra.mxu0 %v121
    %v218 = vpop.f32.mrf.mxu0
    %v219 = vadd.f32 %v81, %v218
    %v220 = vpop.f32.mrf.mxu0
    %v221 = vadd.f32 %v81, %v220
    %222 = vmatmul.bf16.gmra.mxu0 %v122
    %v223 = vpop.f32.mrf.mxu0
    %v224 = vadd.f32 %v81, %v223
    %v225 = vpop.f32.mrf.mxu0
    %v226 = vadd.f32 %v81, %v225
    %227 = vdwg.mxu0
    %v228 = vmax.f32 %v189, 0.0
    %v229 = vmax.f32 %v191, 0.0
    %v230 = vmax.f32 %v194, 0.0
    %v231 = vmax.f32 %v196, 0.0
    %v232 = vmax.f32 %v199, 0.0
    %v233 = vmax.f32 %v201, 0.0
    %v234 = vmax.f32 %v204, 0.0
    %v235 = vmax.f32 %v206, 0.0
    %v236 = vmax.f32 %v209, 0.0
    %v237 = vmax.f32 %v211, 0.0
    %v238 = vmax.f32 %v214, 0.0
    %v239 = vmax.f32 %v216, 0.0
    %v240 = vmax.f32 %v219, 0.0
    %v241 = vmax.f32 %v221, 0.0
    %v242 = vmax.f32 %v224, 0.0
    %v243 = vmax.f32 %v226, 0.0
    %v244 = vpack.c.bf16 %v228, %v228
    %v245 = vpack.c.bf16 %v229, %v229
    %v246 = vpack.c.bf16 %v230, %v230
    %v247 = vpack.c.bf16 %v231, %v231
    %v248 = vpack.c.bf16 %v232, %v232
    %v249 = vpack.c.bf16 %v233, %v233
    %v250 = vpack.c.bf16 %v234, %v234
    %v251 = vpack.c.bf16 %v235, %v235
    %v252 = vpack.c.bf16 %v236, %v236
    %v253 = vpack.c.bf16 %v237, %v237
    %v254 = vpack.c.bf16 %v238, %v238
    %v255 = vpack.c.bf16 %v239, %v239
    %v256 = vpack.c.bf16 %v240, %v240
    %v257 = vpack.c.bf16 %v241, %v241
    %v258 = vpack.c.bf16 %v242, %v242
    %v259 = vpack.c.bf16 %v243, %v243
    %260 = vst [vmem:[#allocation7] sm:$0xf] %v244
    %261 = vst [vmem:[#allocation7 + $0x4] sm:$0xf] %v245
    %262 = vst [vmem:[#allocation7 + $0x8] sm:$0xf] %v246
    %263 = vst [vmem:[#allocation7 + $0xc] sm:$0xf] %v247
    %264 = vst [vmem:[#allocation7 + $0x10] sm:$0xf] %v248
    %265 = vst [vmem:[#allocation7 + $0x14] sm:$0xf] %v249
    %266 = vst [vmem:[#allocation7 + $0x18] sm:$0xf] %v250
    %267 = vst [vmem:[#allocation7 + $0x1c] sm:$0xf] %v251
    %268 = vst [vmem:[#allocation7 + $0x20] sm:$0xf] %v252
    %269 = vst [vmem:[#allocation7 + $0x24] sm:$0xf] %v253
    %270 = vst [vmem:[#allocation7 + $0x28] sm:$0xf] %v254
    %271 = vst [vmem:[#allocation7 + $0x2c] sm:$0xf] %v255
    %272 = vst [vmem:[#allocation7 + $0x30] sm:$0xf] %v256
    %273 = vst [vmem:[#allocation7 + $0x34] sm:$0xf] %v257
    %274 = vst [vmem:[#allocation7 + $0x38] sm:$0xf] %v258
    %275 = vst [vmem:[#allocation7 + $0x3c] sm:$0xf] %v259
    // Predicated region
    $region22: #{tpu_custom_call.1} parent=1 // pred_check
      _
    $region23: #{tpu_custom_call.1} parent=1 // pred_check_branch
      %277 = sbr.rel (0) target = $region25
    $region24: #{tpu_custom_call.1} parent=1 // pred_region
      %279 = vsyncadd [#allocation4], 0
      %s280 = sshll.u32 [#allocation7], 4
      %s281 = int_to_ptr.vmem [resolvable:$true] %s280
      %s282 = sshll.u32 %s3, 4
      %s283 = int_to_ptr.hbm [resolvable:$true] %s282
      %288 = dma.vmem_to_hbm [thread:$0]  %s281, 1024, %s283, [#allocation4], 64, 64, 4
    $region25: #{tpu_custom_call.1} parent=1 // pred_fallthru
      _
    // Predicated region
    $region26: #{tpu_custom_call.1} parent=1 // pred_check
      _
    $region27: #{tpu_custom_call.1} parent=1 // pred_check_branch
      %290 = sbr.rel (0) target = $region29
    $region28: #{tpu_custom_call.1} parent=1 // pred_region
      %292 = dma.done [#allocation4], 1024
    $region29: #{tpu_custom_call.1} parent=1 // pred_fallthru
      _
    %293 = vsyncpa [#allocation3], 1
    %294 = vsyncpa [#allocation6], 1
    %295 = vsyncpa [#allocation4], 1

</llo_original>
